<compile_context>
chip_gen: v5e
topology: v5e:2x2
jax: 0.10.0
libtpu: 0.0.40
codegen_flags: <defaults>
</compile_context>

<pallas_src>
import jax
import jax.numpy as jnp
from jax import lax
from jax.experimental import pallas as pl
from jax.experimental.pallas import tpu as pltpu

LANE = 128  # TPU lane width; conv out_channels == 128 matches it exactly.


def _pick_batch_block(B, L, E, target_rows=8192, vmem_budget_bytes=24 << 20):
    """Batch elements per grid step.

    rows = bb*L conv rows per step; big rows amortize the ~0.35us/step pipeline
    overhead and fill MXU sublanes, but the per-step working set must stay
    inside VMEM (v7x: 64 MiB physical).  bb is either the whole (small) batch
    or a multiple of 8 so the x / output blocks stay (8,128)-aligned.  When
    B >= 16 the block is capped near ceil(B/2) so the 'parallel' grid axis has
    >= 2 steps (v7x has 2 TensorCores)."""
    # Rough per-row VMEM bytes: x double-buffer (bf16) + 3 shifted f32 slabs
    # + bf16 im2col cols + f32 conv activations + temp headroom.
    bytes_per_row = 2 * E * 2 + 3 * E * 4 + 3 * E * 2 + LANE * 4 + LANE * 4
    rows_cap = max(8, min(target_rows, vmem_budget_bytes // bytes_per_row))

    if B * L <= rows_cap:
        if B >= 16:
            half = -(-B // 2)                 # ceil(B/2)
            return -(-half // 8) * 8          # round up to multiple of 8 -> 2 steps
        return B                              # tiny batch: single step, no padding
    # TODO(synk): sequences so long that 8*L overflows the VMEM budget need an
    # L-tiled variant with a resident pooling accumulator; not implemented here.
    bb = max(8, (rows_cap // max(L, 1)) // 8 * 8)
    return min(bb, max(8, -(-B // 8) * 8))


def cnn_classifier_forward(x, w_conv, b_conv, w_fc, b_fc, *, batch_block=None):
    """x: (B, L, E) float32 (the layout the PyTorch forward receives before its
    .permute(0, 2, 1)). Returns logits (B, num_classes) float32."""
    B, L, E = x.shape
    K, E2, Cout = w_conv.shape
    C = w_fc.shape[1]
    assert K == 3 and E2 == E and Cout == LANE and w_fc.shape[0] == Cout

    bb = batch_block if batch_block is not None else _pick_batch_block(B, L, E)
    nblk = -(-B // bb)                 # ceil(B / bb)
    B_pad = nblk * bb
    rows = bb * L                      # conv rows per grid step

    # Pad batch (only if needed); padded samples are sliced off after the call.
    x_p = x if B_pad == B else jnp.pad(x, ((0, B_pad - B), (0, 0), (0, 0)))
    # bf16 on the wire halves the x DMA bytes; batch-major flattening is free.
    xb = x_p.reshape(B_pad * L, E).astype(jnp.bfloat16)

    # im2col weight: (3, E, 128) -> (3E, 128), bf16 MXU operand.
    w_im2col = w_conv.reshape(3 * E, Cout).astype(jnp.bfloat16)
    b_conv2 = b_conv.reshape(1, Cout).astype(jnp.float32)

    # Pad the FC to a lane-dense 128-wide output; slice the first C logits
    # outside.  bf16 MXU operand, bias stays f32.
    C_pad = -(-C // LANE) * LANE
    w_fc_pad = (jnp.zeros((Cout, C_pad), jnp.float32)
                .at[:, :C].set(w_fc.astype(jnp.float32))
                .astype(jnp.bfloat16))
    b_fc_pad = jnp.zeros((1, C_pad), jnp.float32).at[0, :C].set(
        b_fc.astype(jnp.float32))

    inv_L = 1.0 / float(L)             # exact f32 mean scale, applied after the sum

    def kernel(x_ref, wconv_ref, bconv_ref, wfc_ref, bfc_ref, out_ref):
        # x_ref: (bb*L, E) bf16 — bb whole batch elements, rows flattened batch-major.
        xv = x_ref[...].astype(jnp.float32)          # shifts / masks in f32
        pos = lax.broadcasted_iota(jnp.int32, (rows, 1), 0) % L
        # Conv1d(k=3, padding=1): neighbours via sublane rolls (XLU); rows at the
        # start/end of each length-L segment take the implicit zero pad instead
        # (this also kills any cross-batch-element leakage from the wraparound).
        x_prev = jnp.where(pos != 0, pltpu.roll(xv, 1, axis=0), 0.0)
        x_next = jnp.where(pos != L - 1, pltpu.roll(xv, rows - 1, axis=0), 0.0)
        # One fused im2col matmul: K = 3E, bf16 operands, f32 accumulation.
        cols = jnp.concatenate([x_prev, xv, x_next], axis=1).astype(jnp.bfloat16)
        conv = jnp.dot(cols, wconv_ref[...], preferred_element_type=jnp.float32)
        conv = jnp.maximum(conv + bconv_ref[...], 0.0)            # (rows, 128) f32
        # AdaptiveAvgPool1d(1): free reshape + f32 segment sum over the L axis,
        # then exact f32 mean scale.  No MXU work (replaces the old pool matmul).
        pooled = jnp.sum(conv.reshape(bb, L, LANE), axis=1) * inv_L   # (bb, 128) f32
        # Linear(128 -> C, padded to 128 lanes): bf16 MXU operands, f32 acc,
        # f32 bias add; lane-dense store (no vst.msk).
        logits = jnp.dot(pooled.astype(jnp.bfloat16), wfc_ref[...],
                         preferred_element_type=jnp.float32)
        out_ref[...] = logits + bfc_ref[...]

    out = pl.pallas_call(
        kernel,
        out_shape=jax.ShapeDtypeStruct((B_pad, C_pad), jnp.float32),
        grid_spec=pltpu.PrefetchScalarGridSpec(
            num_scalar_prefetch=0,
            grid=(nblk,),
            in_specs=[
                pl.BlockSpec((rows, E), lambda i: (i, 0)),        # x rows for block i
                pl.BlockSpec((3 * E, Cout), lambda i: (0, 0)),    # conv weight (im2col)
                pl.BlockSpec((1, Cout), lambda i: (0, 0)),        # conv bias
                pl.BlockSpec((Cout, C_pad), lambda i: (0, 0)),    # fc weight (bf16, padded)
                pl.BlockSpec((1, C_pad), lambda i: (0, 0)),       # fc bias (padded)
            ],
            out_specs=pl.BlockSpec((bb, C_pad), lambda i: (i, 0)),
        ),
        compiler_params=pltpu.CompilerParams(
            dimension_semantics=("parallel",),
            vmem_limit_bytes=48 * 1024 * 1024),
    )(xb, w_im2col, b_conv2, w_fc_pad, b_fc_pad)

    return out[:B, :C]


def reference_forward(x, w_conv, b_conv, w_fc, b_fc):
    """Pure-JAX f32 reference matching the PyTorch forward semantics."""
    B, L, E = x.shape
    x_pad = jnp.pad(x, ((0, 0), (1, 1), (0, 0)))            # (B, L+2, E)
    conv = jnp.zeros((B, L, w_conv.shape[2]), jnp.float32)
    for k in range(3):
        conv = conv + jnp.einsum('ble,eo->blo', x_pad[:, k:k + L, :], w_conv[k])
    conv = conv + b_conv[None, None, :]
    conv = jnp.maximum(conv, 0.0)
    pooled = jnp.mean(conv, axis=1)                          # (B, 128)
    return pooled @ w_fc + b_fc[None, :]


if __name__ == "__main__":
    # Small shapes consistent with the module: batch=2, seq_len=16,
    # embedding_dim=32, num_classes=10.
    B, L, E, C = 2, 16, 32, 10

    key = jax.random.PRNGKey(0)
    k_x, k_wc, k_bc, k_wf, k_bf = jax.random.split(key, 5)

    x = jax.random.normal(k_x, (B, L, E), dtype=jnp.float32)
    # Conv1d weight in PyTorch is (128, E, 3); stored here as (3, E, 128).
    w_conv = 0.05 * jax.random.normal(k_wc, (3, E, 128), dtype=jnp.float32)
    b_conv = 0.01 * jax.random.normal(k_bc, (128,), dtype=jnp.float32)
    # Linear weight in PyTorch is (C, 128); stored here as (128, C).
    w_fc = 0.05 * jax.random.normal(k_wf, (128, C), dtype=jnp.float32)
    b_fc = 0.01 * jax.random.normal(k_bf, (C,), dtype=jnp.float32)

    out = cnn_classifier_forward(x, w_conv, b_conv, w_fc, b_fc)
    out = jax.block_until_ready(out)
    ref = reference_forward(x, w_conv, b_conv, w_fc, b_fc)
    assert out.shape == (B, C)
    # bf16 MXU operands with f32 accumulation -> looser tolerance than f32 ref.
    assert jnp.allclose(out, ref, atol=2e-2, rtol=2e-2), "mismatch vs reference"

    # Second check: a batch large enough to take the multi-step path
    # (grid=(2,), batch blocking / the two-TensorCore split on v7x).
    B2 = 32
    x2 = jax.random.normal(jax.random.PRNGKey(1), (B2, L, E), dtype=jnp.float32)
    out2 = jax.block_until_ready(
        cnn_classifier_forward(x2, w_conv, b_conv, w_fc, b_fc))
    ref2 = reference_forward(x2, w_conv, b_conv, w_fc, b_fc)
    assert out2.shape == (B2, C)
    assert jnp.allclose(out2, ref2, atol=2e-2, rtol=2e-2), "mismatch vs reference (B=32)"

    print("KERNEL_OK")
</pallas_src>

<mosaic_0001>
module attributes {stable_mosaic.version = 11 : i64} {
  func.func @kernel(%arg0: i32, %arg1: memref<32x32xbf16, #tpu.memory_space<vmem>>, %arg2: memref<96x128xbf16, #tpu.memory_space<vmem>>, %arg3: memref<1x128xf32, #tpu.memory_space<vmem>>, %arg4: memref<128x128xbf16, #tpu.memory_space<vmem>>, %arg5: memref<1x128xf32, #tpu.memory_space<vmem>>, %arg6: memref<2x128xf32, #tpu.memory_space<vmem>>) attributes {dimension_semantics = [#tpu.dimension_semantics<parallel>], iteration_bounds = array<i64: 1>, scalar_prefetch = 0 : i64, scratch_operands = 0 : i64, tpu.core_type = #tpu.core_type<tc>, window_params = [{transform_indices = @transform_0, window_bounds = array<i64: 32, 32>}, {pipeline_mode = #tpu.pipeline_mode<synchronous>, transform_indices = @transform_1, window_bounds = array<i64: 96, 128>}, {pipeline_mode = #tpu.pipeline_mode<synchronous>, transform_indices = @transform_2, window_bounds = array<i64: 1, 128>}, {pipeline_mode = #tpu.pipeline_mode<synchronous>, transform_indices = @transform_3, window_bounds = array<i64: 128, 128>}, {pipeline_mode = #tpu.pipeline_mode<synchronous>, transform_indices = @transform_4, window_bounds = array<i64: 1, 128>}, {transform_indices = @transform_5, window_bounds = array<i64: 2, 128>}]} {
    %c0 = arith.constant 0 : index
    %c0_0 = arith.constant 0 : index
    %0 = vector.load %arg1[%c0, %c0_0] : memref<32x32xbf16, #tpu.memory_space<vmem>>, vector<32x32xbf16>
    %1 = arith.extf %0 : vector<32x32xbf16> to vector<32x32xf32>
    %2 = tpu.iota {dimensions = array<i32: 0>} : vector<32x1xi32>
    %c16_i32 = arith.constant 16 : i32
    %c0_i32 = arith.constant 0 : i32
    %3 = arith.cmpi eq, %c16_i32, %c0_i32 : i32
    %c1_i32 = arith.constant 1 : i32
    %4 = arith.select %3, %c1_i32, %c16_i32 : i32
    %5 = vector.broadcast %4 : i32 to vector<32x1xi32>
    %6 = arith.remsi %2, %5 : vector<32x1xi32>
    %c0_i32_1 = arith.constant 0 : i32
    %7 = vector.broadcast %c0_i32_1 : i32 to vector<32x1xi32>
    %8 = arith.cmpi ne, %6, %7 : vector<32x1xi32>
    %c0_i32_2 = arith.constant 0 : i32
    %9 = vector.broadcast %c0_i32_2 : i32 to vector<32x1xi32>
    %10 = arith.cmpi slt, %6, %9 : vector<32x1xi32>
    %c0_i32_3 = arith.constant 0 : i32
    %11 = arith.cmpi slt, %4, %c0_i32_3 : i32
    %12 = vector.broadcast %11 : i1 to vector<32x1xi1>
    %13 = vector.broadcast %12 : vector<32x1xi1> to vector<32x1xi1>
    %14 = arith.xori %10, %13 : vector<32x1xi1>
    %15 = arith.andi %14, %8 : vector<32x1xi1>
    %16 = vector.broadcast %4 : i32 to vector<32x1xi32>
    %17 = arith.addi %6, %16 : vector<32x1xi32>
    %18 = arith.select %15, %17, %6 : vector<32x1xi1>, vector<32x1xi32>
    %c0_i32_4 = arith.constant 0 : i32
    %19 = vector.broadcast %c0_i32_4 : i32 to vector<32x1xi32>
    %20 = arith.cmpi ne, %18, %19 : vector<32x1xi32>
    %c1_i32_5 = arith.constant 1 : i32
    %21 = tpu.dynamic_rotate %1 by %c1_i32_5 dim 0 : vector<32x32xf32>, i32 -> vector<32x32xf32>
    %cst = arith.constant 0.000000e+00 : f32
    %22 = vector.shape_cast %20 : vector<32x1xi1> to vector<32x1xi1>
    %23 = vector.broadcast %22 : vector<32x1xi1> to vector<32x32xi1>
    %24 = vector.broadcast %cst : f32 to vector<32x32xf32>
    %25 = arith.select %23, %21, %24 : vector<32x32xi1>, vector<32x32xf32>
    %c15_i32 = arith.constant 15 : i32
    %26 = vector.broadcast %c15_i32 : i32 to vector<32x1xi32>
    %27 = arith.cmpi ne, %18, %26 : vector<32x1xi32>
    %c31_i32 = arith.constant 31 : i32
    %28 = tpu.dynamic_rotate %1 by %c31_i32 dim 0 : vector<32x32xf32>, i32 -> vector<32x32xf32>
    %cst_6 = arith.constant 0.000000e+00 : f32
    %29 = vector.shape_cast %27 : vector<32x1xi1> to vector<32x1xi1>
    %30 = vector.broadcast %29 : vector<32x1xi1> to vector<32x32xi1>
    %31 = vector.broadcast %cst_6 : f32 to vector<32x32xf32>
    %32 = arith.select %30, %28, %31 : vector<32x32xi1>, vector<32x32xf32>
    %33 = tpu.concatenate %25, %1, %32 in 1 : vector<32x32xf32>, vector<32x32xf32>, vector<32x32xf32> -> vector<32x96xf32>
    %34 = arith.truncf %33 : vector<32x96xf32> to vector<32x96xbf16>
    %c0_7 = arith.constant 0 : index
    %c0_8 = arith.constant 0 : index
    %35 = vector.load %arg2[%c0_7, %c0_8] : memref<96x128xbf16, #tpu.memory_space<vmem>>, vector<96x128xbf16>
    %cst_9 = arith.constant dense<0.000000e+00> : vector<32x128xf32>
    %36 = tpu.matmul %34, %35, %cst_9 {dimension_numbers = #tpu.dot_dimension_numbers<[1], [0], [0], [1], [0, 0, 1, 1], [], []>} : vector<32x96xbf16>, vector<96x128xbf16>, vector<32x128xf32> -> vector<32x128xf32>
    %c0_10 = arith.constant 0 : index
    %c0_11 = arith.constant 0 : index
    %37 = vector.load %arg3[%c0_10, %c0_11] : memref<1x128xf32, #tpu.memory_space<vmem>>, vector<1x128xf32>
    %38 = vector.broadcast %37 : vector<1x128xf32> to vector<32x128xf32>
    %39 = arith.addf %36, %38 : vector<32x128xf32>
    %cst_12 = arith.constant 0.000000e+00 : f32
    %40 = vector.broadcast %cst_12 : f32 to vector<32x128xf32>
    %41 = arith.maximumf %39, %40 : vector<32x128xf32>
    %42 = vector.shape_cast %41 : vector<32x128xf32> to vector<2x16x128xf32>
    %cst_13 = arith.constant dense<0.000000e+00> : vector<2x128xf32>
    %43 = vector.multi_reduction <add>, %42, %cst_13 [1] : vector<2x16x128xf32> to vector<2x128xf32>
    %cst_14 = arith.constant 6.250000e-02 : f32
    %44 = vector.broadcast %cst_14 : f32 to vector<2x128xf32>
    %45 = arith.mulf %43, %44 : vector<2x128xf32>
    %46 = arith.truncf %45 : vector<2x128xf32> to vector<2x128xbf16>
    %c0_15 = arith.constant 0 : index
    %c0_16 = arith.constant 0 : index
    %47 = vector.load %arg4[%c0_15, %c0_16] : memref<128x128xbf16, #tpu.memory_space<vmem>>, vector<128x128xbf16>
    %cst_17 = arith.constant dense<0.000000e+00> : vector<2x128xf32>
    %48 = tpu.matmul %46, %47, %cst_17 {dimension_numbers = #tpu.dot_dimension_numbers<[1], [0], [0], [1], [0, 0, 1, 1], [], []>} : vector<2x128xbf16>, vector<128x128xbf16>, vector<2x128xf32> -> vector<2x128xf32>
    %c0_18 = arith.constant 0 : index
    %c0_19 = arith.constant 0 : index
    %49 = vector.load %arg5[%c0_18, %c0_19] : memref<1x128xf32, #tpu.memory_space<vmem>>, vector<1x128xf32>
    %50 = vector.broadcast %49 : vector<1x128xf32> to vector<2x128xf32>
    %51 = arith.addf %48, %50 : vector<2x128xf32>
    %c0_20 = arith.constant 0 : index
    %c0_21 = arith.constant 0 : index
    %52 = vector.load %arg6[%c0_20, %c0_21] : memref<2x128xf32, #tpu.memory_space<vmem>>, vector<2x128xf32>
    tpu.vector_store %arg6[%c0_20, %c0_21], %51 {strides = array<i32>} : memref<2x128xf32, #tpu.memory_space<vmem>>, vector<2x128xf32>,
    return
  }
  func.func @transform_0(%arg0: i32) -> (i32, i32) {
    %c0_i32 = arith.constant 0 : i32
    %c0_i32_0 = arith.constant 0 : i32
    return %arg0, %c0_i32 : i32, i32
  }
  func.func @transform_1(%arg0: i32) -> (i32, i32) {
    %c0_i32 = arith.constant 0 : i32
    %c0_i32_0 = arith.constant 0 : i32
    %c0_i32_1 = arith.constant 0 : i32
    return %c0_i32, %c0_i32_0 : i32, i32
  }
  func.func @transform_2(%arg0: i32) -> (i32, i32) {
    %c0_i32 = arith.constant 0 : i32
    %c0_i32_0 = arith.constant 0 : i32
    %c0_i32_1 = arith.constant 0 : i32
    return %c0_i32, %c0_i32_0 : i32, i32
  }
  func.func @transform_3(%arg0: i32) -> (i32, i32) {
    %c0_i32 = arith.constant 0 : i32
    %c0_i32_0 = arith.constant 0 : i32
    %c0_i32_1 = arith.constant 0 : i32
    return %c0_i32, %c0_i32_0 : i32, i32
  }
  func.func @transform_4(%arg0: i32) -> (i32, i32) {
    %c0_i32 = arith.constant 0 : i32
    %c0_i32_0 = arith.constant 0 : i32
    %c0_i32_1 = arith.constant 0 : i32
    return %c0_i32, %c0_i32_0 : i32, i32
  }
  func.func @transform_5(%arg0: i32) -> (i32, i32) {
    %c0_i32 = arith.constant 0 : i32
    %c0_i32_0 = arith.constant 0 : i32
    return %arg0, %c0_i32 : i32, i32
  }
}

</mosaic_0001>

<llo_original>
// kernel: tpu_custom_call.1
$region0: #{tpu_custom_call.1}
  #allocation0 [shape = 'u32[]', space=smem, size = 0x4, offset = 0x4, fixed_abs, tag = 'smem constant byte address 0x4 - core index']
  #allocation1 [shape = 'u32[72,128]{1,0:T(1,128)}', space=vmem, size = 0x9000, scoped, tag = 'internal scratch']
  %s0 = inlined_call_operand.hbm [shape: bf16[32,32], index: 0, kind: input, shape index: {}]
  %s1 = inlined_call_operand.hbm [shape: bf16[96,128], index: 1, kind: input, shape index: {}]
  %s2 = inlined_call_operand.vmem [shape: f32[1,128], index: 2, kind: input, shape index: {}]
  %s3 = inlined_call_operand.hbm [shape: bf16[128,128], index: 3, kind: input, shape index: {}]
  %s4 = inlined_call_operand.vmem [shape: f32[1,128], index: 4, kind: input, shape index: {}]
  %s5 = inlined_call_operand.hbm [shape: f32[2,128], index: 5, kind: output, shape index: {}]
  %s6 = sld [smem:[#allocation0]]
  $region42: #{tpu_custom_call.1} parent=0
    _
  %s8 = ssub.s32 1, %s6
  %s9 = scalar_select 0, %s8, %s6
  $region1: #{tpu_custom_call.1} parent=0
    #allocation2 [shape = 'u8[8192]{0}', space=vmem, size = 0x2000, scoped, tag = 'input window, operand 0, single buffered']
    #allocation3 [shape = 's32[1]{0}', space=sflag, size = 0x4, scoped, tag = 'scoped memory for tpu_custom_call.1']
    #allocation4 [shape = 's32[1]{0}', space=sflag, size = 0x4, scoped, tag = 'scoped memory for tpu_custom_call.1']
    #allocation5 [shape = 'u8[24576]{0}', space=vmem, size = 0x6000, scoped, tag = 'input window, operand 1, single buffered']
    #allocation6 [shape = 's32[1]{0}', space=sflag, size = 0x4, scoped, tag = 'scoped memory for tpu_custom_call.1']
    #allocation7 [shape = 'u8[32768]{0}', space=vmem, size = 0x8000, scoped, tag = 'input window, operand 3, single buffered']
    #allocation8 [shape = 'u8[1024]{0}', space=vmem, size = 0x400, scoped, tag = 'output window, operand 0, single buffered']
    %10 = vsyncpa [#allocation3], 0
    %11 = vsyncpa [#allocation6], 0
    %12 = vsyncpa [#allocation4], 0
    // Predicated region
    $region2: #{tpu_custom_call.1} parent=1 // pred_check
      _
    $region3: #{tpu_custom_call.1} parent=1 // pred_check_branch
      %14 = sbr.rel (0) target = $region5
    $region4: #{tpu_custom_call.1} parent=1 // pred_region
      %16 = vsyncadd [#allocation3], 0
      %s17 = sshll.u32 %s0, 4
      %s18 = int_to_ptr.hbm [resolvable:$true] %s17
      %s19 = sshll.u32 [#allocation2], 4
      %s20 = int_to_ptr.vmem [resolvable:$true] %s19
      %25 = dma.hbm_to_vmem [thread:$0]  %s18, 256, %s20, [#allocation3], 64, 64, 4
    $region5: #{tpu_custom_call.1} parent=1 // pred_fallthru
      _
    // Predicated region
    $region6: #{tpu_custom_call.1} parent=1 // pred_check
      _
    $region7: #{tpu_custom_call.1} parent=1 // pred_check_branch
      %27 = sbr.rel (0) target = $region9
    $region8: #{tpu_custom_call.1} parent=1 // pred_region
      %29 = vsyncadd [#allocation6], 0
      %s30 = sshll.u32 %s1, 4
      %s31 = int_to_ptr.hbm [resolvable:$true] %s30
      %s32 = sshll.u32 [#allocation5], 4
      %s33 = int_to_ptr.vmem [resolvable:$true] %s32
      %38 = dma.hbm_to_vmem [thread:$0]  %s31, 768, %s33, [#allocation6], 64, 64, 4
    $region9: #{tpu_custom_call.1} parent=1 // pred_fallthru
      _
    // Predicated region
    $region10: #{tpu_custom_call.1} parent=1 // pred_check
      _
    $region11: #{tpu_custom_call.1} parent=1 // pred_check_branch
      %40 = sbr.rel (0) target = $region13
    $region12: #{tpu_custom_call.1} parent=1 // pred_region
      _
    $region13: #{tpu_custom_call.1} parent=1 // pred_fallthru
      _
    // Predicated region
    $region14: #{tpu_custom_call.1} parent=1 // pred_check
      _
    $region15: #{tpu_custom_call.1} parent=1 // pred_check_branch
      %42 = sbr.rel (0) target = $region17
    $region16: #{tpu_custom_call.1} parent=1 // pred_region
      %44 = vsyncadd [#allocation6], 0
      %s45 = sshll.u32 %s3, 4
      %s46 = int_to_ptr.hbm [resolvable:$true] %s45
      %s47 = sshll.u32 [#allocation7], 4
      %s48 = int_to_ptr.vmem [resolvable:$true] %s47
      %53 = dma.hbm_to_vmem [thread:$0]  %s46, 1024, %s48, [#allocation6], 64, 64, 4
    $region17: #{tpu_custom_call.1} parent=1 // pred_fallthru
      _
    // Predicated region
    $region18: #{tpu_custom_call.1} parent=1 // pred_check
      _
    $region19: #{tpu_custom_call.1} parent=1 // pred_check_branch
      %55 = sbr.rel (0) target = $region21
    $region20: #{tpu_custom_call.1} parent=1 // pred_region
      _
    $region21: #{tpu_custom_call.1} parent=1 // pred_fallthru
      _
    // Predicated region
    $region22: #{tpu_custom_call.1} parent=1 // pred_check
      _
    $region23: #{tpu_custom_call.1} parent=1 // pred_check_branch
      %57 = sbr.rel (0) target = $region25
    $region24: #{tpu_custom_call.1} parent=1 // pred_region
      %59 = dma.done [#allocation3], 256
    $region25: #{tpu_custom_call.1} parent=1 // pred_fallthru
      _
    // Predicated region
    $region26: #{tpu_custom_call.1} parent=1 // pred_check
      _
    $region27: #{tpu_custom_call.1} parent=1 // pred_check_branch
      %61 = sbr.rel (0) target = $region29
    $region28: #{tpu_custom_call.1} parent=1 // pred_region
      %63 = dma.done [#allocation6], 768
    $region29: #{tpu_custom_call.1} parent=1 // pred_fallthru
      _
    // Predicated region
    $region30: #{tpu_custom_call.1} parent=1 // pred_check
      _
    $region31: #{tpu_custom_call.1} parent=1 // pred_check_branch
      %65 = sbr.rel (0) target = $region33
    $region32: #{tpu_custom_call.1} parent=1 // pred_region
      %67 = dma.done [#allocation6], 1024
    $region33: #{tpu_custom_call.1} parent=1 // pred_fallthru
      _
    %v69 = vld [vmem:[#allocation2] sm:$0xf]
    %v70 = vld [vmem:[#allocation2 + $0x4] sm:$0xf]
    %v71 = vld [vmem:[#allocation2 + $0x8] sm:$0xf]
    %v72 = vld [vmem:[#allocation2 + $0xc] sm:$0xf]
    %v73 = vunpack.c.l.bf16 %v69
    %v74 = vunpack.c.l.bf16 %v70
    %v75 = vunpack.c.l.bf16 %v71
    %v76 = vunpack.c.l.bf16 %v72
    %v77 = vlaneseq
    %v78 = vshrl.u32 %v77, 7
    %v79 = vadd.s32 %v78, 8
    %v80 = vadd.s32 %v78, 16
    %v81 = vadd.s32 %v78, 24
    %vm82 = vcmp.lt.s32.totalorder %v78, 0
    %v83 = vsub.s32 0, %v78
    %v84 = vsel %vm82, %v83, %v78
    %v85 = vshrl.u32 %v84, 4
    %v86 = vand.u32 %v84, 15
    %v87 = vsub.s32 0, %v86
    %v88 = vsel %vm82, %v87, %v86
    %vm89 = vcmp.lt.s32.totalorder %v79, 0
    %v90 = vsub.s32 0, %v79
    %v91 = vsel %vm89, %v90, %v79
    %v92 = vshrl.u32 %v91, 4
    %v93 = vand.u32 %v91, 15
    %v94 = vsub.s32 0, %v93
    %v95 = vsel %vm89, %v94, %v93
    %vm96 = vcmp.lt.s32.totalorder %v80, 0
    %v97 = vsub.s32 0, %v80
    %v98 = vsel %vm96, %v97, %v80
    %v99 = vshrl.u32 %v98, 4
    %v100 = vand.u32 %v98, 15
    %v101 = vsub.s32 0, %v100
    %v102 = vsel %vm96, %v101, %v100
    %vm103 = vcmp.lt.s32.totalorder %v81, 0
    %v104 = vsub.s32 0, %v81
    %v105 = vsel %vm103, %v104, %v81
    %v106 = vshrl.u32 %v105, 4
    %v107 = vand.u32 %v105, 15
    %v108 = vsub.s32 0, %v107
    %v109 = vsel %vm103, %v108, %v107
    %vm110 = vcmp.ne.s32.totalorder %v88, 0
    %vm111 = vcmp.ne.s32.totalorder %v95, 0
    %vm112 = vcmp.ne.s32.totalorder %v102, 0
    %vm113 = vcmp.ne.s32.totalorder %v109, 0
    %vm114 = vcmp.lt.s32.totalorder %v88, 0
    %vm115 = vcmp.lt.s32.totalorder %v95, 0
    %vm116 = vcmp.lt.s32.totalorder %v102, 0
    %vm117 = vcmp.lt.s32.totalorder %v109, 0
    %vm118 = vmand %vm114, %vm110
    %vm119 = vmand %vm115, %vm111
    %vm120 = vmand %vm116, %vm112
    %vm121 = vmand %vm117, %vm113
    %v122 = vadd.s32 %v88, 16
    %v123 = vadd.s32 %v95, 16
    %v124 = vadd.s32 %v102, 16
    %v125 = vadd.s32 %v109, 16
    %v126 = vsel %vm118, %v122, %v88
    %v127 = vsel %vm119, %v123, %v95
    %v128 = vsel %vm120, %v124, %v102
    %v129 = vsel %vm121, %v125, %v109
    %vm130 = vcmp.ne.s32.totalorder %v126, 0
    %vm131 = vcmp.ne.s32.totalorder %v127, 0
    %vm132 = vcmp.ne.s32.totalorder %v128, 0
    %vm133 = vcmp.ne.s32.totalorder %v129, 0
    %v134 = vrot.slane %v73, 7
    %v135 = vrot.slane %v74, 7
    %v136 = vrot.slane %v75, 7
    %v137 = vrot.slane %v76, 7
    %vm138 = vcmp.lt.s32.totalorder %v78, 1
    %v139 = vsel %vm138, %v136, %v137
    %v140 = vsel %vm138, %v135, %v136
    %v141 = vsel %vm138, %v134, %v135
    %v142 = vsel %vm138, %v137, %v134
    %v143 = vsel %vm130, 1, 0
    %v144 = vsel %vm131, 1, 0
    %v145 = vsel %vm132, 1, 0
    %v146 = vsel %vm133, 1, 0
    %vm147 = vcmp.eq.s32.totalorder %v143, 1
    %vm148 = vcmp.eq.s32.totalorder %v144, 1
    %vm149 = vcmp.eq.s32.totalorder %v145, 1
    %vm150 = vcmp.eq.s32.totalorder %v146, 1
    %v151 = vsel %vm147, %v142, 0.0
    %v152 = vsel %vm148, %v141, 0.0
    %v153 = vsel %vm149, %v140, 0.0
    %v154 = vsel %vm150, %v139, 0.0
    %vm155 = vcmp.ne.s32.totalorder %v126, 15
    %vm156 = vcmp.ne.s32.totalorder %v127, 15
    %vm157 = vcmp.ne.s32.totalorder %v128, 15
    %vm158 = vcmp.ne.s32.totalorder %v129, 15
    %v159 = vrot.slane %v73, 1
    %v160 = vrot.slane %v74, 1
    %v161 = vrot.slane %v75, 1
    %v162 = vrot.slane %v76, 1
    %vm163 = vcmp.lt.s32.totalorder %v78, 7
    %v164 = vsel %vm163, %v161, %v162
    %v165 = vsel %vm163, %v160, %v161
    %v166 = vsel %vm163, %v159, %v160
    %v167 = vsel %vm163, %v162, %v159
    %v168 = vsel %vm155, 1, 0
    %v169 = vsel %vm156, 1, 0
    %v170 = vsel %vm157, 1, 0
    %v171 = vsel %vm158, 1, 0
    %vm172 = vcmp.eq.s32.totalorder %v168, 1
    %vm173 = vcmp.eq.s32.totalorder %v169, 1
    %vm174 = vcmp.eq.s32.totalorder %v170, 1
    %vm175 = vcmp.eq.s32.totalorder %v171, 1
    %v176 = vsel %vm172, %v166, 0.0
    %v177 = vsel %vm173, %v165, 0.0
    %v178 = vsel %vm174, %v164, 0.0
    %v179 = vsel %vm175, %v167, 0.0
    %184 = vrot.lane.b32.xlu0 %v73, 32
    %v185 = vpop.permute.xlu0 %184
    %186 = vrot.lane.b32.xlu0 %v74, 32
    %v187 = vpop.permute.xlu0 %186
    %188 = vrot.lane.b32.xlu0 %v75, 32
    %v189 = vpop.permute.xlu0 %188
    %190 = vrot.lane.b32.xlu0 %v76, 32
    %v191 = vpop.permute.xlu0 %190
    %200 = vrot.lane.b32.xlu0 %v176, 64
    %v201 = vpop.permute.xlu0 %200
    %202 = vrot.lane.b32.xlu0 %v177, 64
    %v203 = vpop.permute.xlu0 %202
    %204 = vrot.lane.b32.xlu0 %v178, 64
    %v205 = vpop.permute.xlu0 %204
    %206 = vrot.lane.b32.xlu0 %v179, 64
    %v207 = vpop.permute.xlu0 %206
    %vm212 = vcmask 261120
    %v213 = vsel %vm212, %v151, %v185
    %v214 = vsel %vm212, %v152, %v187
    %v215 = vsel %vm212, %v153, %v189
    %v216 = vsel %vm212, %v154, %v191
    %vm217 = vcmask 523264
    %v218 = vsel %vm217, %v213, %v201
    %v219 = vsel %vm217, %v214, %v203
    %v220 = vsel %vm217, %v215, %v205
    %v221 = vsel %vm217, %v216, %v207
    %v222 = vpack.c.bf16 %v219, %v218
    %v223 = vpack.c.bf16 %v221, %v220
    %v224 = vld [vmem:[#allocation5] sm:$0xf]
    %v225 = vld [vmem:[#allocation5 + $0x4] sm:$0xf]
    %v226 = vld [vmem:[#allocation5 + $0x8] sm:$0xf]
    %v227 = vld [vmem:[#allocation5 + $0xc] sm:$0xf]
    %v228 = vld [vmem:[#allocation5 + $0x10] sm:$0xf]
    %v229 = vld [vmem:[#allocation5 + $0x14] sm:$0xf]
    %v230 = vld [vmem:[#allocation5 + $0x18] sm:$0xf]
    %v231 = vld [vmem:[#allocation5 + $0x1c] sm:$0xf]
    %v232 = vld [vmem:[#allocation5 + $0x20] sm:$0xf]
    %v233 = vld [vmem:[#allocation5 + $0x24] sm:$0xf]
    %v234 = vld [vmem:[#allocation5 + $0x28] sm:$0xf]
    %v235 = vld [vmem:[#allocation5 + $0x2c] sm:$0xf]
    %v236 = vld [vmem:[%s2] sm:$0x1]
    %v238 = vperm.slane %v236, 0
    %v252 = vunpack.c.l.b16 %v224
    %v253 = vunpack.c.l.b16 %v225
    %v254 = vunpack.c.l.b16 %v226
    %v255 = vunpack.c.l.b16 %v227
    %v256 = vunpack.c.l.b16 %v228
    %v257 = vunpack.c.l.b16 %v229
    %v258 = vunpack.c.l.b16 %v230
    %v259 = vunpack.c.l.b16 %v231
    %v260 = vunpack.c.l.b16 %v232
    %v261 = vunpack.c.l.b16 %v233
    %v262 = vunpack.c.l.b16 %v234
    %v263 = vunpack.c.l.b16 %v235
    %v264 = vpack.c.b16 %v253, %v252
    %v265 = vpack.c.b16 %v255, %v254
    %v266 = vpack.c.b16 %v257, %v256
    %v267 = vpack.c.b16 %v259, %v258
    %v268 = vpack.c.b16 %v261, %v260
    %v269 = vpack.c.b16 %v263, %v262
    %vm276 = vcmask 785408
    %v278 = vsel %vm276, %v222, 0
    %v281 = vsel %vm276, %v223, 0
    %283 = vmatpush.bf16.msra.mxu0 0
    %284 = vmatpush.bf16.msra.mxu0 0
    %285 = vmatpush.bf16.msra.mxu0 %v269
    %286 = vmatpush.bf16.msra.mxu0 %v268
    %287 = vmatpush.bf16.msra.mxu0 %v267
    %288 = vmatpush.bf16.msra.mxu0 %v266
    %289 = vmatpush.bf16.msra.mxu0 %v265
    %290 = vmatpush.bf16.msra.mxu0 %v264
    %291 = vmatmul.bf16.gmra.mxu0 %v278
    %v292 = vpop.f32.mrf.mxu0
    %v293 = vadd.f32 %v238, %v292
    %v294 = vpop.f32.mrf.mxu0
    %v295 = vadd.f32 %v238, %v294
    %296 = vmatmul.bf16.gmra.mxu0 %v281
    %v297 = vpop.f32.mrf.mxu0
    %v298 = vadd.f32 %v238, %v297
    %v299 = vpop.f32.mrf.mxu0
    %v300 = vadd.f32 %v238, %v299
    %301 = vdwg.mxu0
    %v302 = vmax.f32 %v293, 0.0
    %v303 = vmax.f32 %v295, 0.0
    %v304 = vmax.f32 %v298, 0.0
    %v305 = vmax.f32 %v300, 0.0
    %v306 = vadd.f32 %v302, %v303
    %v307 = vrot.slane %v306, 4
    %v308 = vadd.f32 %v306, %v307
    %v309 = vrot.slane %v308, 2
    %v310 = vadd.f32 %v308, %v309
    %v311 = vrot.slane %v310, 1
    %v312 = vadd.f32 %v310, %v311
    %v313 = vadd.f32 %v304, %v305
    %v314 = vrot.slane %v313, 4
    %v315 = vadd.f32 %v313, %v314
    %v316 = vrot.slane %v315, 2
    %v317 = vadd.f32 %v315, %v316
    %v318 = vrot.slane %v317, 1
    %v319 = vadd.f32 %v317, %v318
    %v320 = vmul.f32 %v312, 0.0625
    %v321 = vmul.f32 %v319, 0.0625
    %v322 = vpack.c.bf16 %v320, %v320
    %v323 = vpack.c.bf16 %v321, %v321
    %v324 = vld [vmem:[#allocation7] sm:$0xf]
    %v325 = vld [vmem:[#allocation7 + $0x4] sm:$0xf]
    %v326 = vld [vmem:[#allocation7 + $0x8] sm:$0xf]
    %v327 = vld [vmem:[#allocation7 + $0xc] sm:$0xf]
    %v328 = vld [vmem:[#allocation7 + $0x10] sm:$0xf]
    %v329 = vld [vmem:[#allocation7 + $0x14] sm:$0xf]
    %v330 = vld [vmem:[#allocation7 + $0x18] sm:$0xf]
    %v331 = vld [vmem:[#allocation7 + $0x1c] sm:$0xf]
    %v332 = vld [vmem:[#allocation7 + $0x20] sm:$0xf]
    %v333 = vld [vmem:[#allocation7 + $0x24] sm:$0xf]
    %v334 = vld [vmem:[#allocation7 + $0x28] sm:$0xf]
    %v335 = vld [vmem:[#allocation7 + $0x2c] sm:$0xf]
    %v336 = vld [vmem:[#allocation7 + $0x30] sm:$0xf]
    %v337 = vld [vmem:[#allocation7 + $0x34] sm:$0xf]
    %v338 = vld [vmem:[#allocation7 + $0x38] sm:$0xf]
    %v339 = vld [vmem:[#allocation7 + $0x3c] sm:$0xf]
    %v340 = vld [vmem:[%s4] sm:$0x1]
    %v342 = vperm.slane %v340, 0
    %v346 = vunpack.c.l.b16 %v322
    %v347 = vunpack.c.l.b16 %v323
    %vm348 = vcmask 1041409
    %v349 = vsel %vm348, %v347, %v346
    %v350 = vpack.c.b16 %v349, %v349
    %v368 = vunpack.c.l.b16 %v324
    %v369 = vunpack.c.l.b16 %v325
    %v370 = vunpack.c.l.b16 %v326
    %v371 = vunpack.c.l.b16 %v327
    %v372 = vunpack.c.l.b16 %v328
    %v373 = vunpack.c.l.b16 %v329
    %v374 = vunpack.c.l.b16 %v330
    %v375 = vunpack.c.l.b16 %v331
    %v376 = vunpack.c.l.b16 %v332
    %v377 = vunpack.c.l.b16 %v333
    %v378 = vunpack.c.l.b16 %v334
    %v379 = vunpack.c.l.b16 %v335
    %v380 = vunpack.c.l.b16 %v336
    %v381 = vunpack.c.l.b16 %v337
    %v382 = vunpack.c.l.b16 %v338
    %v383 = vunpack.c.l.b16 %v339
    %v384 = vpack.c.b16 %v369, %v368
    %v385 = vpack.c.b16 %v371, %v370
    %v386 = vpack.c.b16 %v373, %v372
    %v387 = vpack.c.b16 %v375, %v374
    %v388 = vpack.c.b16 %v377, %v376
    %v389 = vpack.c.b16 %v379, %v378
    %v390 = vpack.c.b16 %v381, %v380
    %v391 = vpack.c.b16 %v383, %v382
    %400 = vmatpush.bf16.msra.mxu0 %v391
    %401 = vmatpush.bf16.msra.mxu0 %v390
    %402 = vmatpush.bf16.msra.mxu0 %v389
    %403 = vmatpush.bf16.msra.mxu0 %v388
    %404 = vmatpush.bf16.msra.mxu0 %v387
    %405 = vmatpush.bf16.msra.mxu0 %v386
    %406 = vmatpush.bf16.msra.mxu0 %v385
    %407 = vmatpush.bf16.msra.mxu0 %v384
    %408 = vmatmul.bf16.gmra.mxu0 %v350
    %v409 = vpop.f32.mrf.mxu0
    %v410 = vadd.f32 %v342, %v409
    %v411 = vpop.f32.mrf.mxu0
    %412 = vdwg.mxu0
    %413 = vst [vmem:[#allocation8] sm:$0x3] %v410
    // Predicated region
    $region34: #{tpu_custom_call.1} parent=1 // pred_check
      _
    $region35: #{tpu_custom_call.1} parent=1 // pred_check_branch
      %415 = sbr.rel (0) target = $region37
    $region36: #{tpu_custom_call.1} parent=1 // pred_region
      %417 = vsyncadd [#allocation4], 0
      %s419 = sshll.u32 [#allocation8], 4
      %s420 = int_to_ptr.vmem [resolvable:$true] %s419
      %s421 = sshll.u32 %s5, 4
      %s422 = int_to_ptr.hbm [resolvable:$true] %s421
      %424 = dma.vmem_to_hbm [thread:$0]  %s420, 32, %s422, [#allocation4]
    $region37: #{tpu_custom_call.1} parent=1 // pred_fallthru
      _
    // Predicated region
    $region38: #{tpu_custom_call.1} parent=1 // pred_check
      _
    $region39: #{tpu_custom_call.1} parent=1 // pred_check_branch
      %426 = sbr.rel (0) target = $region41
    $region40: #{tpu_custom_call.1} parent=1 // pred_region
      %428 = dma.done [#allocation4], 32
    $region41: #{tpu_custom_call.1} parent=1 // pred_fallthru
      _
    %429 = vsyncpa [#allocation3], 1
    %430 = vsyncpa [#allocation6], 1
    %431 = vsyncpa [#allocation4], 1

</llo_original>
